<compile_context>
chip_gen: v7x
topology: tpu7x:2x2x1
jax: 0.10.0
libtpu: 0.0.40
codegen_flags: <defaults>
</compile_context>

<pallas_src>
import jax
import jax.numpy as jnp
from jax.experimental import pallas as pl
from jax.experimental.pallas import tpu as pltpu


_SMALL_BYTES = 512 * 1024            # <= this: single-block VMEM copy
_TILE_BYTES = 4 * 1024 * 1024        # tiled-VMEM alternative: 4 MiB blocks
_VMEM_LIMIT_BYTES = 32 << 20         # 2 arrays x 2 buffers x 4 MiB = 16 MiB in flight
_MAX_LANE_COLS = 4096                # cap on the lane-dense last dim
_MIN_DMA_CHUNK_BYTES = 1 << 20       # target >= 1 MiB per outstanding DMA chunk
_MAX_DMA_CHUNKS = 8                  # outstanding HBM->HBM DMAs for large clones


def _copy_kernel(x_ref, o_ref):
    # Straight tile copy -- this is all .clone() does.
    o_ref[...] = x_ref[...]


def _clone_cost(nbytes: int) -> pl.CostEstimate:
    # Pure-bandwidth op: read nbytes + write nbytes, zero compute.
    return pl.CostEstimate(flops=0, transcendentals=0, bytes_accessed=2 * nbytes)


def _sublane_multiple(dtype) -> int:
    """Rows-per-vreg multiple: 8 for 32-bit, 16 for 16-bit, 32 for 8-bit dtypes
    (sub-32-bit dtypes pack along sublanes)."""
    itemsize = jnp.dtype(dtype).itemsize
    if itemsize >= 4:
        return 8
    return 8 * (4 // itemsize)


def _choose_lane_dense_2d(total: int, sub_mult: int):
    """Pick (rows, cols) with cols % 128 == 0 (lane-dense); prefer
    rows % sub_mult == 0 so every vreg store is fully unmasked.  Maximizes cols."""
    cap = (min(total, _MAX_LANE_COLS) // 128) * 128
    lane_only = None
    c = cap
    while c >= 128:
        if total % c == 0:
            r = total // c
            if r % sub_mult == 0:
                return r, c          # fully dense vregs
            if lane_only is None:
                lane_only = (r, c)   # lane-dense only (still the big lever)
        c -= 128
    return lane_only                 # may be None


def _single_block_copy(x: jax.Array) -> jax.Array:
    """Whole-array-in-VMEM copy (for small inputs only)."""
    nbytes = x.size * jnp.dtype(x.dtype).itemsize
    return pl.pallas_call(
        _copy_kernel,
        out_shape=jax.ShapeDtypeStruct(x.shape, x.dtype),
        cost_estimate=_clone_cost(nbytes),
    )(x)


def inner_rel_clone_hbm_dma(rel: jax.Array) -> jax.Array:
    """Default large-input clone: chunked HBM->HBM DMA (no VMEM round trip,
    no grid-step overhead, no layout constraints).  Up to _MAX_DMA_CHUNKS
    DMAs are kept in flight with separate semaphores."""
    itemsize = jnp.dtype(rel.dtype).itemsize
    nbytes = rel.size * itemsize
    lead = rel.shape[0] if rel.ndim >= 1 else 1
    n_chunks = int(max(1, min(_MAX_DMA_CHUNKS, lead,
                              max(1, nbytes // _MIN_DMA_CHUNK_BYTES))))
    # Static, evenly spread chunk boundaries along the leading axis.
    bounds = sorted(set((c * lead) // n_chunks for c in range(n_chunks + 1)))
    n = len(bounds) - 1 if len(bounds) > 1 else 1
    single = (rel.ndim == 0) or (n <= 1)

    def kernel(x_hbm, o_hbm, sems):
        copies = []
        if single:
            cp = pltpu.make_async_copy(x_hbm, o_hbm, sems.at[0])
            cp.start()
            copies.append(cp)
        else:
            for c in range(n):
                s, e = bounds[c], bounds[c + 1]
                cp = pltpu.make_async_copy(
                    x_hbm.at[pl.ds(s, e - s)],
                    o_hbm.at[pl.ds(s, e - s)],
                    sems.at[c])
                cp.start()
                copies.append(cp)
        for cp in copies:           # all chunks outstanding before any wait
            cp.wait()

    return pl.pallas_call(
        kernel,
        out_shape=jax.ShapeDtypeStruct(rel.shape, rel.dtype),
        in_specs=[pl.BlockSpec(memory_space=pl.ANY)],
        out_specs=pl.BlockSpec(memory_space=pl.ANY),
        scratch_shapes=[pltpu.SemaphoreType.DMA((max(n, 1),))],
        cost_estimate=_clone_cost(nbytes),
    )(rel)


def inner_rel_clone_tiled_vmem(rel: jax.Array) -> jax.Array:
    """Alternative clone: lane-dense 2D slab, row-tiled, auto-pipelined VMEM copy."""
    itemsize = jnp.dtype(rel.dtype).itemsize
    total = rel.size
    nbytes = total * itemsize
    sub_mult = _sublane_multiple(rel.dtype)

    rc = _choose_lane_dense_2d(total, sub_mult) if total >= 128 else None
    if rc is None:
        # Awkward element counts: never try to fit a big tensor in VMEM as one
        # block -- the DMA clone has no size/layout restrictions.
        if nbytes <= _SMALL_BYTES:
            return _single_block_copy(rel)
        return inner_rel_clone_hbm_dma(rel)

    rows, cols = rc
    x2d = rel.reshape(rows, cols)        # free relayout of contiguous data
    out_shape = jax.ShapeDtypeStruct((rows, cols), rel.dtype)

    # Largest row-tile (multiple of the dtype's sublane pack) under _TILE_BYTES.
    tile_rows = max(sub_mult,
                    (_TILE_BYTES // (cols * itemsize)) // sub_mult * sub_mult)

    if rows <= tile_rows:
        out2d = _single_block_copy(x2d)
    else:
        out2d = pl.pallas_call(
            _copy_kernel,
            out_shape=out_shape,
            grid=(pl.cdiv(rows, tile_rows),),
            in_specs=[pl.BlockSpec((tile_rows, cols), lambda i: (i, 0))],
            out_specs=pl.BlockSpec((tile_rows, cols), lambda i: (i, 0)),
            compiler_params=pltpu.CompilerParams(
                dimension_semantics=("parallel",),
                # 4 MiB blocks x 2 arrays x 2 buffers = 16 MiB in flight; raise
                # the scoped limit explicitly so v5e (16 MiB default) is safe
                # while staying inside v7x's 32 MiB scoped / 64 MiB physical.
                vmem_limit_bytes=_VMEM_LIMIT_BYTES),
            cost_estimate=_clone_cost(nbytes),
        )(x2d)
    return out2d.reshape(rel.shape)


def inner_rel_forward(rel: jax.Array) -> jax.Array:
    """Pallas equivalent of InnerRel.forward(): return a fresh copy of `rel`."""
    itemsize = jnp.dtype(rel.dtype).itemsize
    nbytes = rel.size * itemsize

    if nbytes <= _SMALL_BYTES:
        # Tiny inputs: one lane-dense VMEM block (grid/DMA overhead would dominate).
        sub_mult = _sublane_multiple(rel.dtype)
        rc = _choose_lane_dense_2d(rel.size, sub_mult) if rel.size >= 128 else None
        if rc is None:
            return _single_block_copy(rel)
        rows, cols = rc
        return _single_block_copy(rel.reshape(rows, cols)).reshape(rel.shape)

    # Large inputs: chunked HBM->HBM DMA clone -- identical HBM traffic, zero
    # grid-step overhead, no VMEM footprint, works for any shape/dtype, and is
    # at-or-above the tiled VMEM path on every generation (v5e/v6e/v7x).
    return inner_rel_clone_hbm_dma(rel)


class InnerRel:
    """Thin JAX-side mirror of the PyTorch module."""

    def __init__(self, rel: jax.Array):
        self.rel = rel

    def __call__(self) -> jax.Array:
        return inner_rel_forward(self.rel)


if __name__ == "__main__":
    # Deterministic "parameter" tensor matching the module's stored `rel`.
    key = jax.random.PRNGKey(0)
    rel = jax.random.normal(key, (2, 4, 16, 16), dtype=jnp.float32)

    module = InnerRel(rel)
    out = jax.block_until_ready(module())

    # Clone semantics: identical values/shape/dtype in a distinct buffer.
    assert out.shape == rel.shape and out.dtype == rel.dtype
    assert bool(jnp.all(out == rel))

    # Directly exercise the HBM->HBM DMA clone kernel on the small input.
    out_dma = jax.block_until_ready(inner_rel_clone_hbm_dma(rel))
    assert out_dma.shape == rel.shape and bool(jnp.all(out_dma == rel))

    # Exercise the large-input dispatch (multi-chunk DMA clone) and the tiled
    # VMEM alternative on a modest 16 MiB tensor with exactly representable values.
    big = jnp.arange(8 * 32 * 128 * 128, dtype=jnp.float32).reshape(8, 32, 128, 128)
    big_out = jax.block_until_ready(inner_rel_forward(big))
    assert big_out.shape == big.shape and bool(jnp.all(big_out == big))
    big_tiled = jax.block_until_ready(inner_rel_clone_tiled_vmem(big))
    assert bool(jnp.all(big_tiled == big))

    print("KERNEL_OK")
</pallas_src>

<mosaic_0001>
module attributes {stable_mosaic.version = 11 : i64} {
  func.func @_copy_kernel(%arg0: memref<8x256xf32, #tpu.memory_space<vmem>>, %arg1: memref<8x256xf32, #tpu.memory_space<vmem>>) attributes {dimension_semantics = [], scalar_prefetch = 0 : i64, scratch_operands = 0 : i64, tpu.core_type = #tpu.core_type<tc>} {
    %c0 = arith.constant 0 : index
    %c0_0 = arith.constant 0 : index
    %0 = vector.load %arg0[%c0, %c0_0] : memref<8x256xf32, #tpu.memory_space<vmem>>, vector<8x256xf32>
    %c0_1 = arith.constant 0 : index
    %c0_2 = arith.constant 0 : index
    %1 = vector.load %arg1[%c0_1, %c0_2] : memref<8x256xf32, #tpu.memory_space<vmem>>, vector<8x256xf32>
    tpu.vector_store %arg1[%c0_1, %c0_2], %0 {strides = array<i32>} : memref<8x256xf32, #tpu.memory_space<vmem>>, vector<8x256xf32>,
    return
  }
}

</mosaic_0001>

<llo_original>
// kernel: tpu_custom_call.1
$region0: #{tpu_custom_call.1}
  #allocation0 [shape = 'u32[]', space=smem, size = 0x4, offset = 0x4, fixed_abs, tag = 'smem constant byte address 0x4 - core index']
  #allocation1 [shape = 'u32[144,128]{1,0:T(1,128)}', space=vmem, size = 0x12000, scoped, tag = 'internal scratch']
  %s0 = inlined_call_operand.hbm [shape: f32[8,256], index: 0, kind: input, shape index: {}]
  %s1 = inlined_call_operand.hbm [shape: f32[8,256], index: 1, kind: output, shape index: {}]
  %s2 = sld [smem:[#allocation0]]
  $region18: #{tpu_custom_call.1} parent=0
    _
  %s4 = ssub.s32 1, %s2
  %s5 = scalar_select 0, %s4, %s2
  $region1: #{tpu_custom_call.1} parent=0
    #allocation2 [shape = 'u8[8192]{0}', space=vmem, size = 0x2000, scoped, tag = 'input window, operand 0, single buffered']
    #allocation3 [shape = 's32[1]{0}', space=sflag, size = 0x4, scoped, tag = 'scoped memory for tpu_custom_call.1']
    #allocation4 [shape = 's32[1]{0}', space=sflag, size = 0x4, scoped, tag = 'scoped memory for tpu_custom_call.1']
    #allocation5 [shape = 'u8[8192]{0}', space=vmem, size = 0x2000, scoped, tag = 'output window, operand 0, single buffered']
    %6 = vsyncpa [#allocation3], 0
    %7 = vsyncpa [#allocation4], 0
    // Predicated region
    $region2: #{tpu_custom_call.1} parent=1 // pred_check
      _
    $region3: #{tpu_custom_call.1} parent=1 // pred_check_branch
      %9 = sbr.rel (0) target = $region5
    $region4: #{tpu_custom_call.1} parent=1 // pred_region
      %s11 = ssub.s32 256, 256
      %12 = vsyncadd [#allocation3], %s11
      %s14 = sshll.u32 [#allocation2], 4
      %s15 = int_to_ptr.vmem [resolvable:$true] %s14
      %17 = dma.hbm_to_vmem [thread:$0]  %s0, 256, %s15, [#allocation3]
    $region5: #{tpu_custom_call.1} parent=1 // pred_fallthru
      _
    // Predicated region
    $region6: #{tpu_custom_call.1} parent=1 // pred_check
      _
    $region7: #{tpu_custom_call.1} parent=1 // pred_check_branch
      %19 = sbr.rel (0) target = $region9
    $region8: #{tpu_custom_call.1} parent=1 // pred_region
      %20 = dma.done [#allocation3], 256
    $region9: #{tpu_custom_call.1} parent=1 // pred_fallthru
      _
    %v21 = vld [vmem:[#allocation2] sm:$0xff]
    %v22 = vld [vmem:[#allocation2 + $0x8] sm:$0xff]
    %23 = vst [vmem:[#allocation5] sm:$0xff] %v21
    %24 = vst [vmem:[#allocation5 + $0x8] sm:$0xff] %v22
    // Predicated region
    $region10: #{tpu_custom_call.1} parent=1 // pred_check
      _
    $region11: #{tpu_custom_call.1} parent=1 // pred_check_branch
      %26 = sbr.rel (0) target = $region13
    $region12: #{tpu_custom_call.1} parent=1 // pred_region
      %s28 = ssub.s32 256, 256
      %29 = vsyncadd [#allocation4], %s28
      %s31 = sshll.u32 [#allocation5], 4
      %s32 = int_to_ptr.vmem [resolvable:$true] %s31
      %34 = dma.vmem_to_hbm [thread:$0]  %s32, 256, %s1, [#allocation4]
    $region13: #{tpu_custom_call.1} parent=1 // pred_fallthru
      _
    // Predicated region
    $region14: #{tpu_custom_call.1} parent=1 // pred_check
      _
    $region15: #{tpu_custom_call.1} parent=1 // pred_check_branch
      %36 = sbr.rel (0) target = $region17
    $region16: #{tpu_custom_call.1} parent=1 // pred_region
      %37 = dma.done [#allocation4], 256
    $region17: #{tpu_custom_call.1} parent=1 // pred_fallthru
      _
    %38 = vsyncpa [#allocation3], 1
    %39 = vsyncpa [#allocation4], 1

</llo_original>
